<compile_context>
chip_gen: v7x
topology: tpu7x:2x2x1
jax: 0.10.0
libtpu: 0.0.40
codegen_flags: <defaults>
</compile_context>

<pallas_src>
import jax
import jax.numpy as jnp
from jax.experimental import pallas as pl
from jax.experimental.pallas import tpu as pltpu


def _round_up(x, m):
    return ((x + m - 1) // m) * m


def _encoder_kernel(x_ref, w_ref, b_ref, o_ref):
    # x_ref : (TB, F)  f32   activation tile (streams over the batch grid)
    # w_ref : (F, H)   bf16  pre-transposed weight, resident across the grid
    # b_ref : (1, H)   f32   bias (broadcast over rows)
    # o_ref : (TB, H)  f32   output tile (Pallas masks the ragged final block)
    x = x_ref[...].astype(jnp.bfloat16)               # VPU cast, hidden under MXU/store
    acc = jax.lax.dot_general(
        x, w_ref[...],
        dimension_numbers=(((1,), (0,)), ((), ())),   # plain NN matmul (no transpose)
        preferred_element_type=jnp.float32)           # f32 accumulate on the MXU
    o_ref[...] = jnp.maximum(acc + b_ref[...], 0.0).astype(o_ref.dtype)


def prepare_encoder_params(weight, bias):
    """One-time parameter prep (call at init, NOT per forward).

    weight : (n_hidden, n_feature) f32  -- torch.nn.Linear layout
    bias   : (n_hidden,) f32
    returns: (w_t, b2) with w_t: (n_feature, n_hidden) bf16, b2: (1, n_hidden) f32
    """
    H, F = weight.shape
    w_t = jnp.asarray(weight).T.astype(jnp.bfloat16)      # (F, H) NN layout for the MXU
    b2 = jnp.asarray(bias, jnp.float32).reshape(1, H)
    return w_t, b2


def encoder_forward(x, w_t, b2, *, block_b=1024):
    """relu(x @ W.T + b) via a Pallas TPU kernel, with W pre-prepared as w_t = W.T (bf16).

    x   : (B, n_feature) f32
    w_t : (n_feature, n_hidden) bf16   (from prepare_encoder_params)
    b2  : (1, n_hidden) f32
    returns: (B, n_hidden) f32
    """
    B, F = x.shape
    Fw, H = w_t.shape
    assert Fw == F, "weight feature dim must match x"
    assert b2.shape == (1, H)

    # Batch tile: large to amortize per-grid-step overhead, but
    #  (a) >= 2 tiles when B >= 16 so v7x's two TensorCores both get work,
    #  (b) capped by a VMEM budget sized for v7x's 64 MiB VMEM.
    TB = min(block_b, _round_up(B, 8))
    if B >= 16:
        TB = min(TB, _round_up((B + 1) // 2, 8))

    param_bytes = 2 * (F * H * 2) + 2 * (H * 4)       # resident bf16 weight + f32 bias (dbl-buffered)
    per_row_bytes = 2 * (F * 4 + H * 4)               # dbl-buffered f32 x tile + f32 out tile, per row
    budget = 40 * 1024 * 1024 - param_bytes           # leave headroom under v7x's 64 MiB
    tb_cap = max(8, (budget // per_row_bytes) // 8 * 8)
    TB = min(TB, tb_cap)
    # TODO(synk): if F*H grows so the resident bf16 weight no longer fits the VMEM
    # budget (e.g. F=H=4096 on v7x), add H (and K) grid axes and tile the weight.

    grid = (pl.cdiv(B, TB),)                          # ragged final block -> masked stores

    vmem_limit = param_bytes + TB * per_row_bytes
    vmem_limit = int(min(max(2 * vmem_limit, 4 << 20), 48 << 20))

    return pl.pallas_call(
        _encoder_kernel,
        out_shape=jax.ShapeDtypeStruct((B, H), jnp.float32),  # exact shape: no padding, no wrapper slice
        grid=grid,
        in_specs=[
            pl.BlockSpec((TB, F), lambda i: (i, 0)),  # activations stream over batch (raw f32)
            pl.BlockSpec((F, H), lambda i: (0, 0)),   # weight: constant block index -> fetched once, stays resident
            pl.BlockSpec((1, H), lambda i: (0, 0)),   # bias resident
        ],
        out_specs=pl.BlockSpec((TB, H), lambda i: (i, 0)),
        compiler_params=pltpu.CompilerParams(
            dimension_semantics=("parallel",),        # batch tiles are independent (megacore split)
            vmem_limit_bytes=vmem_limit),
    )(x, w_t, b2)


if __name__ == "__main__":
    # Small shapes consistent with the module: Encoder(n_feature=32, n_hidden=64)
    batch, n_feature, n_hidden = 8, 32, 64

    key = jax.random.PRNGKey(0)
    kx, kw, kb = jax.random.split(key, 3)

    x = jax.random.normal(kx, (batch, n_feature), dtype=jnp.float32)
    # Deterministic synthetic parameters (mimicking Linear's uniform init scale)
    bound = 1.0 / (n_feature ** 0.5)
    weight = jax.random.uniform(kw, (n_hidden, n_feature), jnp.float32,
                                minval=-bound, maxval=bound)
    bias = jax.random.uniform(kb, (n_hidden,), jnp.float32,
                              minval=-bound, maxval=bound)

    # One-time parameter prep (outside the forward path).
    w_t, b2 = prepare_encoder_params(weight, bias)

    out = encoder_forward(x, w_t, b2)
    jax.block_until_ready(out)
    assert out.shape == (batch, n_hidden)

    # Reference 1: exact math the kernel performs (bf16 inputs, f32 accumulate).
    x_bf = x.astype(jnp.bfloat16).astype(jnp.float32)
    w_bf = weight.astype(jnp.bfloat16).astype(jnp.float32)
    ref_bf16 = jnp.maximum(x_bf @ w_bf.T + bias, 0.0)
    assert jnp.allclose(out, ref_bf16, atol=1e-4, rtol=1e-4)

    # Reference 2: the original full-f32 PyTorch forward (loose tol for bf16 inputs).
    ref_f32 = jnp.maximum(x @ weight.T + bias, 0.0)
    assert jnp.allclose(out, ref_f32, atol=3e-2, rtol=3e-2)

    print("KERNEL_OK")
</pallas_src>

<mosaic_0001>
module attributes {stable_mosaic.version = 11 : i64} {
  func.func @_encoder_kernel(%arg0: i32, %arg1: memref<8x32xf32, #tpu.memory_space<vmem>>, %arg2: memref<32x64xbf16, #tpu.memory_space<vmem>>, %arg3: memref<1x64xf32, #tpu.memory_space<vmem>>, %arg4: memref<8x64xf32, #tpu.memory_space<vmem>>) attributes {dimension_semantics = [#tpu.dimension_semantics<parallel>], iteration_bounds = array<i64: 1>, scalar_prefetch = 0 : i64, scratch_operands = 0 : i64, tpu.core_type = #tpu.core_type<tc>, window_params = [{transform_indices = @transform_0, window_bounds = array<i64: 8, 32>}, {pipeline_mode = #tpu.pipeline_mode<synchronous>, transform_indices = @transform_1, window_bounds = array<i64: 32, 64>}, {pipeline_mode = #tpu.pipeline_mode<synchronous>, transform_indices = @transform_2, window_bounds = array<i64: 1, 64>}, {transform_indices = @transform_3, window_bounds = array<i64: 8, 64>}]} {
    %c0 = arith.constant 0 : index
    %c0_0 = arith.constant 0 : index
    %0 = vector.load %arg1[%c0, %c0_0] : memref<8x32xf32, #tpu.memory_space<vmem>>, vector<8x32xf32>
    %1 = arith.truncf %0 : vector<8x32xf32> to vector<8x32xbf16>
    %c0_1 = arith.constant 0 : index
    %c0_2 = arith.constant 0 : index
    %2 = vector.load %arg2[%c0_1, %c0_2] : memref<32x64xbf16, #tpu.memory_space<vmem>>, vector<32x64xbf16>
    %cst = arith.constant dense<0.000000e+00> : vector<8x64xf32>
    %3 = tpu.matmul %1, %2, %cst {dimension_numbers = #tpu.dot_dimension_numbers<[1], [0], [0], [1], [0, 0, 1, 1], [], []>} : vector<8x32xbf16>, vector<32x64xbf16>, vector<8x64xf32> -> vector<8x64xf32>
    %c0_3 = arith.constant 0 : index
    %c0_4 = arith.constant 0 : index
    %4 = vector.load %arg3[%c0_3, %c0_4] : memref<1x64xf32, #tpu.memory_space<vmem>>, vector<1x64xf32>
    %5 = vector.broadcast %4 : vector<1x64xf32> to vector<8x64xf32>
    %6 = arith.addf %3, %5 : vector<8x64xf32>
    %cst_5 = arith.constant 0.000000e+00 : f32
    %7 = vector.broadcast %cst_5 : f32 to vector<8x64xf32>
    %8 = arith.maximumf %6, %7 : vector<8x64xf32>
    %c0_6 = arith.constant 0 : index
    %c0_7 = arith.constant 0 : index
    %9 = vector.load %arg4[%c0_6, %c0_7] : memref<8x64xf32, #tpu.memory_space<vmem>>, vector<8x64xf32>
    tpu.vector_store %arg4[%c0_6, %c0_7], %8 {strides = array<i32>} : memref<8x64xf32, #tpu.memory_space<vmem>>, vector<8x64xf32>,
    return
  }
  func.func @transform_0(%arg0: i32) -> (i32, i32) {
    %c0_i32 = arith.constant 0 : i32
    %c0_i32_0 = arith.constant 0 : i32
    return %arg0, %c0_i32 : i32, i32
  }
  func.func @transform_1(%arg0: i32) -> (i32, i32) {
    %c0_i32 = arith.constant 0 : i32
    %c0_i32_0 = arith.constant 0 : i32
    %c0_i32_1 = arith.constant 0 : i32
    return %c0_i32, %c0_i32_0 : i32, i32
  }
  func.func @transform_2(%arg0: i32) -> (i32, i32) {
    %c0_i32 = arith.constant 0 : i32
    %c0_i32_0 = arith.constant 0 : i32
    %c0_i32_1 = arith.constant 0 : i32
    return %c0_i32, %c0_i32_0 : i32, i32
  }
  func.func @transform_3(%arg0: i32) -> (i32, i32) {
    %c0_i32 = arith.constant 0 : i32
    %c0_i32_0 = arith.constant 0 : i32
    return %arg0, %c0_i32 : i32, i32
  }
}

</mosaic_0001>

<llo_original>
// kernel: tpu_custom_call.1
$region0: #{tpu_custom_call.1}
  #allocation0 [shape = 'u32[]', space=smem, size = 0x4, offset = 0x4, fixed_abs, tag = 'smem constant byte address 0x4 - core index']
  #allocation1 [shape = 'u32[144,128]{1,0:T(1,128)}', space=vmem, size = 0x12000, scoped, tag = 'internal scratch']
  %s0 = inlined_call_operand.hbm [shape: f32[8,32], index: 0, kind: input, shape index: {}]
  %s1 = inlined_call_operand.hbm [shape: bf16[32,64], index: 1, kind: input, shape index: {}]
  %s2 = inlined_call_operand.vmem [shape: f32[1,64], index: 2, kind: input, shape index: {}]
  %s3 = inlined_call_operand.hbm [shape: f32[8,64], index: 3, kind: output, shape index: {}]
  %s4 = sld [smem:[#allocation0]]
  $region30: #{tpu_custom_call.1} parent=0
    _
  %s6 = ssub.s32 1, %s4
  %s7 = scalar_select 0, %s6, %s4
  $region1: #{tpu_custom_call.1} parent=0
    #allocation2 [shape = 'u8[4096]{0}', space=vmem, size = 0x1000, scoped, tag = 'input window, operand 0, single buffered']
    #allocation3 [shape = 's32[1]{0}', space=sflag, size = 0x4, scoped, tag = 'scoped memory for tpu_custom_call.1']
    #allocation4 [shape = 's32[1]{0}', space=sflag, size = 0x4, scoped, tag = 'scoped memory for tpu_custom_call.1']
    #allocation5 [shape = 'u8[8192]{0}', space=vmem, size = 0x2000, scoped, tag = 'input window, operand 1, single buffered']
    #allocation6 [shape = 's32[1]{0}', space=sflag, size = 0x4, scoped, tag = 'scoped memory for tpu_custom_call.1']
    #allocation7 [shape = 'u8[4096]{0}', space=vmem, size = 0x1000, scoped, tag = 'output window, operand 0, single buffered']
    %8 = vsyncpa [#allocation3], 0
    %9 = vsyncpa [#allocation6], 0
    %10 = vsyncpa [#allocation4], 0
    // Predicated region
    $region2: #{tpu_custom_call.1} parent=1 // pred_check
      _
    $region3: #{tpu_custom_call.1} parent=1 // pred_check_branch
      %12 = sbr.rel (0) target = $region5
    $region4: #{tpu_custom_call.1} parent=1 // pred_region
      %s14 = ssub.s32 128, 128
      %15 = vsyncadd [#allocation3], %s14
      %s17 = sshll.u32 [#allocation2], 4
      %s18 = int_to_ptr.vmem [resolvable:$true] %s17
      %20 = dma.hbm_to_vmem [thread:$0]  %s0, 128, %s18, [#allocation3]
    $region5: #{tpu_custom_call.1} parent=1 // pred_fallthru
      _
    // Predicated region
    $region6: #{tpu_custom_call.1} parent=1 // pred_check
      _
    $region7: #{tpu_custom_call.1} parent=1 // pred_check_branch
      %22 = sbr.rel (0) target = $region9
    $region8: #{tpu_custom_call.1} parent=1 // pred_region
      %s24 = ssub.s32 256, 256
      %25 = vsyncadd [#allocation6], %s24
      %s26 = sshll.u32 [#allocation5], 4
      %s27 = int_to_ptr.vmem [resolvable:$true] %s26
      %32 = dma.hbm_to_vmem [thread:$0]  %s1, 256, %s27, [#allocation6], 64, 64, 4
    $region9: #{tpu_custom_call.1} parent=1 // pred_fallthru
      _
    // Predicated region
    $region10: #{tpu_custom_call.1} parent=1 // pred_check
      _
    $region11: #{tpu_custom_call.1} parent=1 // pred_check_branch
      %34 = sbr.rel (0) target = $region13
    $region12: #{tpu_custom_call.1} parent=1 // pred_region
      _
    $region13: #{tpu_custom_call.1} parent=1 // pred_fallthru
      _
    // Predicated region
    $region14: #{tpu_custom_call.1} parent=1 // pred_check
      _
    $region15: #{tpu_custom_call.1} parent=1 // pred_check_branch
      %36 = sbr.rel (0) target = $region17
    $region16: #{tpu_custom_call.1} parent=1 // pred_region
      %37 = dma.done [#allocation3], 128
    $region17: #{tpu_custom_call.1} parent=1 // pred_fallthru
      _
    // Predicated region
    $region18: #{tpu_custom_call.1} parent=1 // pred_check
      _
    $region19: #{tpu_custom_call.1} parent=1 // pred_check_branch
      %39 = sbr.rel (0) target = $region21
    $region20: #{tpu_custom_call.1} parent=1 // pred_region
      %40 = dma.done [#allocation6], 256
    $region21: #{tpu_custom_call.1} parent=1 // pred_fallthru
      _
    %v42 = vld [vmem:[#allocation2] sm:$0xff]
    %v43 = vpack.c.bf16 %v42, %v42
    %v44 = vld [vmem:[#allocation5] sm:$0xf]
    %v45 = vld [vmem:[#allocation5 + $0x4] sm:$0xf]
    %v46 = vld [vmem:[#allocation5 + $0x8] sm:$0xf]
    %v47 = vld [vmem:[#allocation5 + $0xc] sm:$0xf]
    %v48 = vld [vmem:[%s2] sm:$0x1]
    %v50 = vlaneseq
    %v51 = vshrl.u32 %v50, 7
    %v52 = vsub.s32 0, %v51
    %v53 = vrot.slane %v48, %v52
    %v59 = vunpack.c.l.b16 %v44
    %v60 = vunpack.c.l.b16 %v45
    %v61 = vunpack.c.l.b16 %v46
    %v62 = vunpack.c.l.b16 %v47
    %v63 = vpack.c.b16 %v60, %v59
    %v64 = vpack.c.b16 %v62, %v61
    %vm67 = vcmask 261120
    %v69 = vsel %vm67, %v43, 0
    %71 = vmatprep.subr.bf16.mxu0 0
    %72 = vmatpush1.bf16.msra.mxu0 %v63
    %73 = vmatprep.subr.bf16.mxu0 0
    %74 = vmatpush1.bf16.msra.mxu0 %v64
    %75 = vmatprep.subr.bf16.mxu0 0
    %76 = vmatpush1.bf16.msra.mxu0 0
    %77 = vmatprep.subr.bf16.mxu0 0
    %78 = vmatpush1.bf16.msra.mxu0 0
    %79 = vmatprep.subr.bf16.mxu0 0
    %80 = vmatpush1.bf16.msra.mxu0 0
    %81 = vmatprep.subr.bf16.mxu0 0
    %82 = vmatpush1.bf16.msra.mxu0 0
    %83 = vmatprep.subr.bf16.mxu0 0
    %84 = vmatpush1.bf16.msra.mxu0 0
    %85 = vmatprep.subr.bf16.mxu0 0
    %86 = vmatpush1.bf16.msra.mxu0 0
    %87 = vmatprep.subr.bf16.mxu0 0
    %88 = vmatpush1.bf16.msra.mxu0 0
    %89 = vmatprep.subr.bf16.mxu0 0
    %90 = vmatpush1.bf16.msra.mxu0 0
    %91 = vmatprep.subr.bf16.mxu0 0
    %92 = vmatpush1.bf16.msra.mxu0 0
    %93 = vmatprep.subr.bf16.mxu0 0
    %94 = vmatpush1.bf16.msra.mxu0 0
    %95 = vmatprep.subr.bf16.mxu0 0
    %96 = vmatpush1.bf16.msra.mxu0 0
    %97 = vmatprep.subr.bf16.mxu0 0
    %98 = vmatpush1.bf16.msra.mxu0 0
    %99 = vmatprep.subr.bf16.mxu0 0
    %100 = vmatpush1.bf16.msra.mxu0 0
    %101 = vmatprep.subr.bf16.mxu0 0
    %102 = vmatpush1.bf16.msra.mxu0 0
    %103 = vmatprep.mubr.bf16.mxu0 0
    %104 = vmatmul.mubr.bf16.gmra.mrb[0].mxu0 %v69
    %v105 = vpop.f32.mrb[0].mxu0
    %v106 = vadd.f32 %v53, %v105
    %v107 = vpop.f32.mrb[0].mxu0
    %v108 = vpop.f32.mrb[0].mxu0
    %v109 = vpop.f32.mrb[0].mxu0
    %110 = vdwg.mxu0
    %v111 = vmax.f32 %v106, 0.0
    %vm112 = vcmask 523264
    %113 = vst.msk [vmem:[#allocation7] sm:$0xff] %vm112, %v111
    // Predicated region
    $region22: #{tpu_custom_call.1} parent=1 // pred_check
      _
    $region23: #{tpu_custom_call.1} parent=1 // pred_check_branch
      %115 = sbr.rel (0) target = $region25
    $region24: #{tpu_custom_call.1} parent=1 // pred_region
      %s117 = ssub.s32 128, 128
      %118 = vsyncadd [#allocation4], %s117
      %s120 = sshll.u32 [#allocation7], 4
      %s121 = int_to_ptr.vmem [resolvable:$true] %s120
      %123 = dma.vmem_to_hbm [thread:$0]  %s121, 128, %s3, [#allocation4]
    $region25: #{tpu_custom_call.1} parent=1 // pred_fallthru
      _
    // Predicated region
    $region26: #{tpu_custom_call.1} parent=1 // pred_check
      _
    $region27: #{tpu_custom_call.1} parent=1 // pred_check_branch
      %125 = sbr.rel (0) target = $region29
    $region28: #{tpu_custom_call.1} parent=1 // pred_region
      %126 = dma.done [#allocation4], 128
    $region29: #{tpu_custom_call.1} parent=1 // pred_fallthru
      _
    %127 = vsyncpa [#allocation3], 1
    %128 = vsyncpa [#allocation6], 1
    %129 = vsyncpa [#allocation4], 1

</llo_original>
